<compile_context>
chip_gen: v7x
topology: tpu7x:2x2x1
jax: 0.10.0
libtpu: 0.0.40
codegen_flags: <defaults>
</compile_context>

<pallas_src>
import functools

import jax
import jax.numpy as jnp
import numpy as np
from jax.experimental import pallas as pl
from jax.experimental.pallas import tpu as pltpu


# ----------------------------------------------------------------------------
# Kernel: full attention forward for one block of batch elements.
# ----------------------------------------------------------------------------
def _attention_kernel(x_ref, wq_ref, wk_ref, wv_ref, bq_ref, bk_ref, bv_ref,
                      o_ref, *, scale):
    f32 = jnp.float32
    x = x_ref[...]                                # [Bb, S, H]
    bb, s, h = x.shape

    # Fill MXU rows: one [Bb*S, H] x [H, H] matmul per projection (last dim kept as
    # the lane dim, so the reshape is a cheap leading-dim merge).
    x2 = x.reshape(bb * s, h)
    # Fold the 1/sqrt(H) scale into q (bias included => identical to scaling scores).
    q = (jnp.dot(x2, wq_ref[...], preferred_element_type=f32) + bq_ref[...]) * scale
    k = jnp.dot(x2, wk_ref[...], preferred_element_type=f32) + bk_ref[...]
    v = jnp.dot(x2, wv_ref[...], preferred_element_type=f32) + bv_ref[...]
    q = q.reshape(bb, s, h)
    k = k.reshape(bb, s, h)
    v = v.reshape(bb, s, h)

    # scores[b, i, j] = <q[b,i,:], k[b,j,:]>   (scale already folded into q)
    scores = jnp.einsum('bqd,bkd->bqk', q, k, preferred_element_type=f32)

    # Softmax over the last axis (max-subtracted; identical to F.softmax).
    m = jnp.max(scores, axis=-1, keepdims=True)
    e = jnp.exp(scores - m)
    w = e / jnp.sum(e, axis=-1, keepdims=True)

    out = jnp.einsum('bqk,bkd->bqd', w, v, preferred_element_type=f32)
    o_ref[...] = out.astype(o_ref.dtype)


# ----------------------------------------------------------------------------
# Wrapper.
# ----------------------------------------------------------------------------
def attention_forward(hidden_states, wq, bq, wk, bk, wv, bv, *, block_b=None):
    """hidden_states: [B, S, H]. Wx: [H, H] in x@W layout (= nn.Linear weight.T). bx: [H]."""
    B, S, H = hidden_states.shape

    if block_b is None:
        # Largest divisor of B whose per-step working set (x/q/k/v/out + scores,
        # double-buffered x & out) stays comfortably inside the scoped-VMEM default.
        per_sample = (5 * S * H + S * S) * 4 * 2
        block_b = B
        while block_b > 1 and block_b * per_sample > (8 << 20):
            block_b -= 1
            while B % block_b:
                block_b -= 1
    assert B % block_b == 0

    scale = 1.0 / float(H) ** 0.5
    bq2 = bq.reshape(1, H)
    bk2 = bk.reshape(1, H)
    bv2 = bv.reshape(1, H)

    kern = functools.partial(_attention_kernel, scale=scale)
    full_w = pl.BlockSpec((H, H), lambda i: (0, 0))
    full_b = pl.BlockSpec((1, H), lambda i: (0, 0))

    return pl.pallas_call(
        kern,
        out_shape=jax.ShapeDtypeStruct((B, S, H), hidden_states.dtype),
        grid=(B // block_b,),
        in_specs=[
            pl.BlockSpec((block_b, S, H), lambda i: (i, 0, 0)),
            full_w, full_w, full_w,
            full_b, full_b, full_b,
        ],
        out_specs=pl.BlockSpec((block_b, S, H), lambda i: (i, 0, 0)),
        compiler_params=pltpu.CompilerParams(dimension_semantics=("parallel",)),
    )(hidden_states, wq, wk, wv, bq2, bk2, bv2)


# ----------------------------------------------------------------------------
# Pure-JAX reference (mirrors the PyTorch forward 1:1) for verification.
# ----------------------------------------------------------------------------
def _ref_attention(x, wq, bq, wk, bk, wv, bv):
    h = x.shape[-1]
    q = x @ wq + bq
    k = x @ wk + bk
    v = x @ wv + bv
    scores = jnp.einsum('bqd,bkd->bqk', q, k) / h ** 0.5
    w = jax.nn.softmax(scores, axis=-1)
    return jnp.einsum('bqk,bkd->bqd', w, v)


if __name__ == "__main__":
    B, S, H = 2, 16, 32   # batch, sequence, hidden_dim

    key = jax.random.PRNGKey(0)
    kx, kq, kk, kv, kbq, kbk, kbv = jax.random.split(key, 7)
    x = jax.random.normal(kx, (B, S, H), jnp.float32)

    # nn.Linear(H, H): y = x @ W.T + b.  We generate the weights already in x@W
    # layout (i.e. W.T), which is semantically identical for random init.
    limit = 1.0 / H ** 0.5
    wq = jax.random.uniform(kq, (H, H), jnp.float32, -limit, limit)
    wk = jax.random.uniform(kk, (H, H), jnp.float32, -limit, limit)
    wv = jax.random.uniform(kv, (H, H), jnp.float32, -limit, limit)
    bq = jax.random.uniform(kbq, (H,), jnp.float32, -limit, limit)
    bk = jax.random.uniform(kbk, (H,), jnp.float32, -limit, limit)
    bv = jax.random.uniform(kbv, (H,), jnp.float32, -limit, limit)

    fwd = jax.jit(attention_forward)
    out = jax.block_until_ready(fwd(x, wq, bq, wk, bk, wv, bv))
    assert out.shape == (B, S, H)

    ref = _ref_attention(x, wq, bq, wk, bk, wv, bv)
    np.testing.assert_allclose(np.asarray(out), np.asarray(ref), rtol=2e-3, atol=2e-3)

    print("KERNEL_OK")
</pallas_src>

<mosaic_0001>
module attributes {stable_mosaic.version = 11 : i64} {
  func.func @_attention_kernel(%arg0: i32, %arg1: memref<2x16x32xf32, #tpu.memory_space<vmem>>, %arg2: memref<32x32xf32, #tpu.memory_space<vmem>>, %arg3: memref<32x32xf32, #tpu.memory_space<vmem>>, %arg4: memref<32x32xf32, #tpu.memory_space<vmem>>, %arg5: memref<1x32xf32, #tpu.memory_space<vmem>>, %arg6: memref<1x32xf32, #tpu.memory_space<vmem>>, %arg7: memref<1x32xf32, #tpu.memory_space<vmem>>, %arg8: memref<2x16x32xf32, #tpu.memory_space<vmem>>) attributes {dimension_semantics = [#tpu.dimension_semantics<parallel>], iteration_bounds = array<i64: 1>, scalar_prefetch = 0 : i64, scratch_operands = 0 : i64, tpu.core_type = #tpu.core_type<tc>, window_params = [{transform_indices = @transform_0, window_bounds = array<i64: 2, 16, 32>}, {pipeline_mode = #tpu.pipeline_mode<synchronous>, transform_indices = @transform_1, window_bounds = array<i64: 32, 32>}, {pipeline_mode = #tpu.pipeline_mode<synchronous>, transform_indices = @transform_2, window_bounds = array<i64: 32, 32>}, {pipeline_mode = #tpu.pipeline_mode<synchronous>, transform_indices = @transform_3, window_bounds = array<i64: 32, 32>}, {pipeline_mode = #tpu.pipeline_mode<synchronous>, transform_indices = @transform_4, window_bounds = array<i64: 1, 32>}, {pipeline_mode = #tpu.pipeline_mode<synchronous>, transform_indices = @transform_5, window_bounds = array<i64: 1, 32>}, {pipeline_mode = #tpu.pipeline_mode<synchronous>, transform_indices = @transform_6, window_bounds = array<i64: 1, 32>}, {transform_indices = @transform_7, window_bounds = array<i64: 2, 16, 32>}]} {
    %c0 = arith.constant 0 : index
    %c0_0 = arith.constant 0 : index
    %c0_1 = arith.constant 0 : index
    %0 = vector.load %arg1[%c0, %c0_0, %c0_1] : memref<2x16x32xf32, #tpu.memory_space<vmem>>, vector<2x16x32xf32>
    %1 = vector.shape_cast %0 : vector<2x16x32xf32> to vector<32x32xf32>
    %c0_2 = arith.constant 0 : index
    %c0_3 = arith.constant 0 : index
    %2 = vector.load %arg2[%c0_2, %c0_3] : memref<32x32xf32, #tpu.memory_space<vmem>>, vector<32x32xf32>
    %cst = arith.constant dense<0.000000e+00> : vector<32x32xf32>
    %3 = tpu.matmul %1, %2, %cst {dimension_numbers = #tpu.dot_dimension_numbers<[1], [0], [0], [1], [0, 0, 1, 1], [], []>} : vector<32x32xf32>, vector<32x32xf32>, vector<32x32xf32> -> vector<32x32xf32>
    %c0_4 = arith.constant 0 : index
    %c0_5 = arith.constant 0 : index
    %4 = vector.load %arg5[%c0_4, %c0_5] : memref<1x32xf32, #tpu.memory_space<vmem>>, vector<1x32xf32>
    %5 = vector.broadcast %4 : vector<1x32xf32> to vector<32x32xf32>
    %6 = arith.addf %3, %5 : vector<32x32xf32>
    %cst_6 = arith.constant 0.176776692 : f32
    %7 = vector.broadcast %cst_6 : f32 to vector<32x32xf32>
    %8 = arith.mulf %6, %7 : vector<32x32xf32>
    %c0_7 = arith.constant 0 : index
    %c0_8 = arith.constant 0 : index
    %9 = vector.load %arg3[%c0_7, %c0_8] : memref<32x32xf32, #tpu.memory_space<vmem>>, vector<32x32xf32>
    %cst_9 = arith.constant dense<0.000000e+00> : vector<32x32xf32>
    %10 = tpu.matmul %1, %9, %cst_9 {dimension_numbers = #tpu.dot_dimension_numbers<[1], [0], [0], [1], [0, 0, 1, 1], [], []>} : vector<32x32xf32>, vector<32x32xf32>, vector<32x32xf32> -> vector<32x32xf32>
    %c0_10 = arith.constant 0 : index
    %c0_11 = arith.constant 0 : index
    %11 = vector.load %arg6[%c0_10, %c0_11] : memref<1x32xf32, #tpu.memory_space<vmem>>, vector<1x32xf32>
    %12 = vector.broadcast %11 : vector<1x32xf32> to vector<32x32xf32>
    %13 = arith.addf %10, %12 : vector<32x32xf32>
    %c0_12 = arith.constant 0 : index
    %c0_13 = arith.constant 0 : index
    %14 = vector.load %arg4[%c0_12, %c0_13] : memref<32x32xf32, #tpu.memory_space<vmem>>, vector<32x32xf32>
    %cst_14 = arith.constant dense<0.000000e+00> : vector<32x32xf32>
    %15 = tpu.matmul %1, %14, %cst_14 {dimension_numbers = #tpu.dot_dimension_numbers<[1], [0], [0], [1], [0, 0, 1, 1], [], []>} : vector<32x32xf32>, vector<32x32xf32>, vector<32x32xf32> -> vector<32x32xf32>
    %c0_15 = arith.constant 0 : index
    %c0_16 = arith.constant 0 : index
    %16 = vector.load %arg7[%c0_15, %c0_16] : memref<1x32xf32, #tpu.memory_space<vmem>>, vector<1x32xf32>
    %17 = vector.broadcast %16 : vector<1x32xf32> to vector<32x32xf32>
    %18 = arith.addf %15, %17 : vector<32x32xf32>
    %19 = vector.shape_cast %8 : vector<32x32xf32> to vector<2x16x32xf32>
    %20 = vector.shape_cast %13 : vector<32x32xf32> to vector<2x16x32xf32>
    %21 = vector.shape_cast %18 : vector<32x32xf32> to vector<2x16x32xf32>
    "tpu.trace_start"() <{level = 10 : i32, message = "bqd,bkd->bqk"}> : () -> ()
    %cst_17 = arith.constant dense<0.000000e+00> : vector<2x16x16xf32>
    %22 = tpu.matmul %19, %20, %cst_17 {dimension_numbers = #tpu.dot_dimension_numbers<[2], [2], [1], [1], [0, 0, 0, 1, 1, 1], [0], [0]>} : vector<2x16x32xf32>, vector<2x16x32xf32>, vector<2x16x16xf32> -> vector<2x16x16xf32>
    "tpu.trace_stop"() : () -> ()
    %cst_18 = arith.constant dense<0xFF800000> : vector<2x16xf32>
    %23 = vector.multi_reduction <maximumf>, %22, %cst_18 [2] : vector<2x16x16xf32> to vector<2x16xf32>
    %24 = vector.shape_cast %23 : vector<2x16xf32> to vector<2x16x1xf32>
    %25 = vector.broadcast %24 : vector<2x16x1xf32> to vector<2x16x16xf32>
    %26 = arith.subf %22, %25 : vector<2x16x16xf32>
    %27 = math.exp %26 : vector<2x16x16xf32>
    %cst_19 = arith.constant dense<0.000000e+00> : vector<2x16xf32>
    %28 = vector.multi_reduction <add>, %27, %cst_19 [2] : vector<2x16x16xf32> to vector<2x16xf32>
    %29 = vector.shape_cast %28 : vector<2x16xf32> to vector<2x16x1xf32>
    %30 = vector.broadcast %29 : vector<2x16x1xf32> to vector<2x16x16xf32>
    %31 = arith.divf %27, %30 : vector<2x16x16xf32>
    "tpu.trace_start"() <{level = 10 : i32, message = "bqk,bkd->bqd"}> : () -> ()
    %cst_20 = arith.constant dense<0.000000e+00> : vector<2x16x32xf32>
    %32 = tpu.matmul %31, %21, %cst_20 {dimension_numbers = #tpu.dot_dimension_numbers<[2], [1], [1], [2], [0, 0, 0, 1, 1, 2], [0], [0]>} : vector<2x16x16xf32>, vector<2x16x32xf32>, vector<2x16x32xf32> -> vector<2x16x32xf32>
    "tpu.trace_stop"() : () -> ()
    %c0_21 = arith.constant 0 : index
    %c0_22 = arith.constant 0 : index
    %c0_23 = arith.constant 0 : index
    %33 = vector.load %arg8[%c0_21, %c0_22, %c0_23] : memref<2x16x32xf32, #tpu.memory_space<vmem>>, vector<2x16x32xf32>
    tpu.vector_store %arg8[%c0_21, %c0_22, %c0_23], %32 {strides = array<i32>} : memref<2x16x32xf32, #tpu.memory_space<vmem>>, vector<2x16x32xf32>,
    return
  }
  func.func @transform_0(%arg0: i32) -> (i32, i32, i32) {
    %c0_i32 = arith.constant 0 : i32
    %c0_i32_0 = arith.constant 0 : i32
    %c0_i32_1 = arith.constant 0 : i32
    return %arg0, %c0_i32, %c0_i32_0 : i32, i32, i32
  }
  func.func @transform_1(%arg0: i32) -> (i32, i32) {
    %c0_i32 = arith.constant 0 : i32
    %c0_i32_0 = arith.constant 0 : i32
    %c0_i32_1 = arith.constant 0 : i32
    return %c0_i32, %c0_i32_0 : i32, i32
  }
  func.func @transform_2(%arg0: i32) -> (i32, i32) {
    %c0_i32 = arith.constant 0 : i32
    %c0_i32_0 = arith.constant 0 : i32
    %c0_i32_1 = arith.constant 0 : i32
    return %c0_i32, %c0_i32_0 : i32, i32
  }
  func.func @transform_3(%arg0: i32) -> (i32, i32) {
    %c0_i32 = arith.constant 0 : i32
    %c0_i32_0 = arith.constant 0 : i32
    %c0_i32_1 = arith.constant 0 : i32
    return %c0_i32, %c0_i32_0 : i32, i32
  }
  func.func @transform_4(%arg0: i32) -> (i32, i32) {
    %c0_i32 = arith.constant 0 : i32
    %c0_i32_0 = arith.constant 0 : i32
    %c0_i32_1 = arith.constant 0 : i32
    return %c0_i32, %c0_i32_0 : i32, i32
  }
  func.func @transform_5(%arg0: i32) -> (i32, i32) {
    %c0_i32 = arith.constant 0 : i32
    %c0_i32_0 = arith.constant 0 : i32
    %c0_i32_1 = arith.constant 0 : i32
    return %c0_i32, %c0_i32_0 : i32, i32
  }
  func.func @transform_6(%arg0: i32) -> (i32, i32) {
    %c0_i32 = arith.constant 0 : i32
    %c0_i32_0 = arith.constant 0 : i32
    %c0_i32_1 = arith.constant 0 : i32
    return %c0_i32, %c0_i32_0 : i32, i32
  }
  func.func @transform_7(%arg0: i32) -> (i32, i32, i32) {
    %c0_i32 = arith.constant 0 : i32
    %c0_i32_0 = arith.constant 0 : i32
    %c0_i32_1 = arith.constant 0 : i32
    return %arg0, %c0_i32, %c0_i32_0 : i32, i32, i32
  }
}

</mosaic_0001>

<llo_original>
// kernel: attention_forward.1
$region0: #{attention_forward.1}
  #allocation0 [shape = 'u32[]', space=smem, size = 0x4, offset = 0x4, fixed_abs, tag = 'smem constant byte address 0x4 - core index']
  #allocation1 [shape = 'u32[144,128]{1,0:T(1,128)}', space=vmem, size = 0x12000, scoped, tag = 'internal scratch']
  %s0 = inlined_call_operand.hbm [shape: f32[2,16,32], index: 0, kind: input, shape index: {}]
  %s1 = inlined_call_operand.hbm [shape: f32[32,32], index: 1, kind: input, shape index: {}]
  %s2 = inlined_call_operand.hbm [shape: f32[32,32], index: 2, kind: input, shape index: {}]
  %s3 = inlined_call_operand.hbm [shape: f32[32,32], index: 3, kind: input, shape index: {}]
  %s4 = inlined_call_operand.vmem [shape: f32[1,32], index: 4, kind: input, shape index: {}]
  %s5 = inlined_call_operand.vmem [shape: f32[1,32], index: 5, kind: input, shape index: {}]
  %s6 = inlined_call_operand.vmem [shape: f32[1,32], index: 6, kind: input, shape index: {}]
  %s7 = inlined_call_operand.hbm [shape: f32[2,16,32], index: 7, kind: output, shape index: {}]
  %s8 = sld [smem:[#allocation0]]
  $region54: #{attention_forward.1} parent=0
    _
  %s10 = ssub.s32 1, %s8
  %s11 = scalar_select 0, %s10, %s8
  $region1: #{attention_forward.1} parent=0
    #allocation2 [shape = 'u8[16384]{0}', space=vmem, size = 0x4000, scoped, tag = 'input window, operand 0, single buffered']
    #allocation3 [shape = 's32[1]{0}', space=sflag, size = 0x4, scoped, tag = 'scoped memory for attention_forward.1']
    #allocation4 [shape = 's32[1]{0}', space=sflag, size = 0x4, scoped, tag = 'scoped memory for attention_forward.1']
    #allocation5 [shape = 'u8[16384]{0}', space=vmem, size = 0x4000, scoped, tag = 'input window, operand 1, single buffered']
    #allocation6 [shape = 's32[1]{0}', space=sflag, size = 0x4, scoped, tag = 'scoped memory for attention_forward.1']
    #allocation7 [shape = 'u8[16384]{0}', space=vmem, size = 0x4000, scoped, tag = 'input window, operand 2, single buffered']
    #allocation8 [shape = 'u8[16384]{0}', space=vmem, size = 0x4000, scoped, tag = 'input window, operand 3, single buffered']
    #allocation9 [shape = 's32[1]{0}', space=sflag, size = 0x4, scoped, tag = 'scoped memory for attention_forward.1']
    #allocation10 [shape = 'u8[16384]{0}', space=vmem, size = 0x4000, scoped, tag = 'output window, operand 0, single buffered']
    %12 = vsyncpa [#allocation3], 0
    %13 = vsyncpa [#allocation6], 0
    %14 = vsyncpa [#allocation9], 0
    %15 = vsyncpa [#allocation4], 0
    // Predicated region
    $region2: #{attention_forward.1} parent=1 // pred_check
      _
    $region3: #{attention_forward.1} parent=1 // pred_check_branch
      %17 = sbr.rel (0) target = $region5
    $region4: #{attention_forward.1} parent=1 // pred_region
      %s19 = ssub.s32 512, 512
      %20 = vsyncadd [#allocation3], %s19
      %s21 = sshll.u32 [#allocation2], 4
      %s22 = int_to_ptr.vmem [resolvable:$true] %s21
      %27 = dma.hbm_to_vmem [thread:$0]  %s0, 512, %s22, [#allocation3], 128, 128, 8
    $region5: #{attention_forward.1} parent=1 // pred_fallthru
      _
    // Predicated region
    $region6: #{attention_forward.1} parent=1 // pred_check
      _
    $region7: #{attention_forward.1} parent=1 // pred_check_branch
      %29 = sbr.rel (0) target = $region9
    $region8: #{attention_forward.1} parent=1 // pred_region
      %s31 = ssub.s32 512, 512
      %32 = vsyncadd [#allocation6], %s31
      %s33 = sshll.u32 [#allocation5], 4
      %s34 = int_to_ptr.vmem [resolvable:$true] %s33
      %39 = dma.hbm_to_vmem [thread:$0]  %s1, 512, %s34, [#allocation6], 128, 128, 8
    $region9: #{attention_forward.1} parent=1 // pred_fallthru
      _
    // Predicated region
    $region10: #{attention_forward.1} parent=1 // pred_check
      _
    $region11: #{attention_forward.1} parent=1 // pred_check_branch
      %41 = sbr.rel (0) target = $region13
    $region12: #{attention_forward.1} parent=1 // pred_region
      %s43 = ssub.s32 512, 512
      %44 = vsyncadd [#allocation6], %s43
      %s45 = sshll.u32 [#allocation7], 4
      %s46 = int_to_ptr.vmem [resolvable:$true] %s45
      %51 = dma.hbm_to_vmem [thread:$0]  %s2, 512, %s46, [#allocation6], 128, 128, 8
    $region13: #{attention_forward.1} parent=1 // pred_fallthru
      _
    // Predicated region
    $region14: #{attention_forward.1} parent=1 // pred_check
      _
    $region15: #{attention_forward.1} parent=1 // pred_check_branch
      %53 = sbr.rel (0) target = $region17
    $region16: #{attention_forward.1} parent=1 // pred_region
      %s55 = ssub.s32 512, 512
      %56 = vsyncadd [#allocation9], %s55
      %s57 = sshll.u32 [#allocation8], 4
      %s58 = int_to_ptr.vmem [resolvable:$true] %s57
      %63 = dma.hbm_to_vmem [thread:$0]  %s3, 512, %s58, [#allocation9], 128, 128, 8
    $region17: #{attention_forward.1} parent=1 // pred_fallthru
      _
    // Predicated region
    $region18: #{attention_forward.1} parent=1 // pred_check
      _
    $region19: #{attention_forward.1} parent=1 // pred_check_branch
      %65 = sbr.rel (0) target = $region21
    $region20: #{attention_forward.1} parent=1 // pred_region
      _
    $region21: #{attention_forward.1} parent=1 // pred_fallthru
      _
    // Predicated region
    $region22: #{attention_forward.1} parent=1 // pred_check
      _
    $region23: #{attention_forward.1} parent=1 // pred_check_branch
      %67 = sbr.rel (0) target = $region25
    $region24: #{attention_forward.1} parent=1 // pred_region
      _
    $region25: #{attention_forward.1} parent=1 // pred_fallthru
      _
    // Predicated region
    $region26: #{attention_forward.1} parent=1 // pred_check
      _
    $region27: #{attention_forward.1} parent=1 // pred_check_branch
      %69 = sbr.rel (0) target = $region29
    $region28: #{attention_forward.1} parent=1 // pred_region
      _
    $region29: #{attention_forward.1} parent=1 // pred_fallthru
      _
    // Predicated region
    $region30: #{attention_forward.1} parent=1 // pred_check
      _
    $region31: #{attention_forward.1} parent=1 // pred_check_branch
      %71 = sbr.rel (0) target = $region33
    $region32: #{attention_forward.1} parent=1 // pred_region
      %72 = dma.done [#allocation3], 512
    $region33: #{attention_forward.1} parent=1 // pred_fallthru
      _
    // Predicated region
    $region34: #{attention_forward.1} parent=1 // pred_check
      _
    $region35: #{attention_forward.1} parent=1 // pred_check_branch
      %74 = sbr.rel (0) target = $region37
    $region36: #{attention_forward.1} parent=1 // pred_region
      %75 = dma.done [#allocation6], 512
    $region37: #{attention_forward.1} parent=1 // pred_fallthru
      _
    // Predicated region
    $region38: #{attention_forward.1} parent=1 // pred_check
      _
    $region39: #{attention_forward.1} parent=1 // pred_check_branch
      %77 = sbr.rel (0) target = $region41
    $region40: #{attention_forward.1} parent=1 // pred_region
      %78 = dma.done [#allocation6], 512
    $region41: #{attention_forward.1} parent=1 // pred_fallthru
      _
    // Predicated region
    $region42: #{attention_forward.1} parent=1 // pred_check
      _
    $region43: #{attention_forward.1} parent=1 // pred_check_branch
      %80 = sbr.rel (0) target = $region45
    $region44: #{attention_forward.1} parent=1 // pred_region
      %81 = dma.done [#allocation9], 512
    $region45: #{attention_forward.1} parent=1 // pred_fallthru
      _
    %v82 = vld [vmem:[#allocation2] sm:$0xff]
    %v83 = vld [vmem:[#allocation2 + $0x8] sm:$0xff]
    %v84 = vld [vmem:[#allocation2 + $0x10] sm:$0xff]
    %v85 = vld [vmem:[#allocation2 + $0x18] sm:$0xff]
    %v86 = vld [vmem:[#allocation5] sm:$0xff]
    %v87 = vld [vmem:[#allocation5 + $0x8] sm:$0xff]
    %v88 = vld [vmem:[#allocation5 + $0x10] sm:$0xff]
    %v89 = vld [vmem:[#allocation5 + $0x18] sm:$0xff]
    %v90 = vld [vmem:[%s4] sm:$0x1]
    %v92 = vlaneseq
    %v93 = vshrl.u32 %v92, 7
    %v94 = vsub.s32 0, %v93
    %v95 = vrot.slane %v90, %v94
    %vm97 = vcmask 261120
    %v99 = vsel %vm97, %v82, 0
    %v102 = vsel %vm97, %v83, 0
    %v105 = vsel %vm97, %v84, 0
    %v108 = vsel %vm97, %v85, 0
    %110 = vmatprep.subr.mxu0 0.0
    %111 = vmatpush1.msra.mxu0 %v86
    %112 = vmatprep.subr.mxu0 0.0
    %113 = vmatpush1.msra.mxu0 %v87
    %114 = vmatprep.subr.mxu0 0.0
    %115 = vmatpush1.msra.mxu0 %v88
    %116 = vmatprep.subr.mxu0 0.0
    %117 = vmatpush1.msra.mxu0 %v89
    %118 = vmatprep.subr.mxu0 0.0
    %119 = vmatpush1.msra.mxu0 0.0
    %120 = vmatprep.subr.mxu0 0.0
    %121 = vmatpush1.msra.mxu0 0.0
    %122 = vmatprep.subr.mxu0 0.0
    %123 = vmatpush1.msra.mxu0 0.0
    %124 = vmatprep.subr.mxu0 0.0
    %125 = vmatpush1.msra.mxu0 0.0
    %126 = vmatprep.subr.mxu0 0.0
    %127 = vmatpush1.msra.mxu0 0.0
    %128 = vmatprep.subr.mxu0 0.0
    %129 = vmatpush1.msra.mxu0 0.0
    %130 = vmatprep.subr.mxu0 0.0
    %131 = vmatpush1.msra.mxu0 0.0
    %132 = vmatprep.subr.mxu0 0.0
    %133 = vmatpush1.msra.mxu0 0.0
    %134 = vmatprep.subr.mxu0 0.0
    %135 = vmatpush1.msra.mxu0 0.0
    %136 = vmatprep.subr.mxu0 0.0
    %137 = vmatpush1.msra.mxu0 0.0
    %138 = vmatprep.subr.mxu0 0.0
    %139 = vmatpush1.msra.mxu0 0.0
    %140 = vmatprep.subr.mxu0 0.0
    %141 = vmatpush1.msra.mxu0 0.0
    %142 = vmatprep.subr.mxu0 0.0
    %143 = vmatpush1.msra.mxu0 0.0
    %144 = vmatprep.subr.mxu0 0.0
    %145 = vmatpush1.msra.mxu0 0.0
    %146 = vmatprep.subr.mxu0 0.0
    %147 = vmatpush1.msra.mxu0 0.0
    %148 = vmatprep.subr.mxu0 0.0
    %149 = vmatpush1.msra.mxu0 0.0
    %150 = vmatprep.subr.mxu0 0.0
    %151 = vmatpush1.msra.mxu0 0.0
    %152 = vmatprep.subr.mxu0 0.0
    %153 = vmatpush1.msra.mxu0 0.0
    %154 = vmatprep.subr.mxu0 0.0
    %155 = vmatpush1.msra.mxu0 0.0
    %156 = vmatprep.subr.mxu0 0.0
    %157 = vmatpush1.msra.mxu0 0.0
    %158 = vmatprep.subr.mxu0 0.0
    %159 = vmatpush1.msra.mxu0 0.0
    %160 = vmatprep.subr.mxu0 0.0
    %161 = vmatpush1.msra.mxu0 0.0
    %162 = vmatprep.subr.mxu0 0.0
    %163 = vmatpush1.msra.mxu0 0.0
    %164 = vmatprep.subr.mxu0 0.0
    %165 = vmatpush1.msra.mxu0 0.0
    %166 = vmatprep.subr.mxu0 0.0
    %167 = vmatpush1.msra.mxu0 0.0
    %168 = vmatprep.subr.mxu0 0.0
    %169 = vmatpush1.msra.mxu0 0.0
    %170 = vmatprep.subr.mxu0 0.0
    %171 = vmatpush1.msra.mxu0 0.0
    %172 = vmatprep.subr.mxu0 0.0
    %173 = vmatpush1.msra.mxu0 0.0
    %174 = vmatprep.mubr.f32.mxu0 0.0
    %175 = vmatmul.mubr.f32.gmra.mrb[0].mxu0 %v99
    %v176 = vpop.f32.mrb[0].mxu0
    %v177 = vadd.f32 %v95, %v176
    %v178 = vpop.f32.mrb[0].mxu0
    %179 = vmatprep.mubr.f32.mxu0 0.0
    %180 = vmatmul.mubr.f32.gmra.mrb[0].mxu0 %v102
    %v181 = vpop.f32.mrb[0].mxu0
    %v182 = vadd.f32 %v95, %v181
    %v183 = vpop.f32.mrb[0].mxu0
    %184 = vmatprep.mubr.f32.mxu0 0.0
    %185 = vmatmul.mubr.f32.gmra.mrb[0].mxu0 %v105
    %v186 = vpop.f32.mrb[0].mxu0
    %v187 = vadd.f32 %v95, %v186
    %v188 = vpop.f32.mrb[0].mxu0
    %189 = vmatprep.mubr.f32.mxu0 0.0
    %190 = vmatmul.mubr.f32.gmra.mrb[0].mxu0 %v108
    %v191 = vpop.f32.mrb[0].mxu0
    %v192 = vadd.f32 %v95, %v191
    %v193 = vpop.f32.mrb[0].mxu0
    %194 = vdwg.mxu0
    %v195 = vmul.f32 %v177, 0.17677669
    %v196 = vmul.f32 %v182, 0.17677669
    %v197 = vmul.f32 %v187, 0.17677669
    %v198 = vmul.f32 %v192, 0.17677669
    %v199 = vld [vmem:[#allocation7] sm:$0xff]
    %v200 = vld [vmem:[#allocation7 + $0x8] sm:$0xff]
    %v201 = vld [vmem:[#allocation7 + $0x10] sm:$0xff]
    %v202 = vld [vmem:[#allocation7 + $0x18] sm:$0xff]
    %v203 = vld [vmem:[%s5] sm:$0x1]
    %v205 = vlaneseq
    %v206 = vshrl.u32 %v205, 7
    %v207 = vsub.s32 0, %v206
    %v208 = vrot.slane %v203, %v207
    %210 = vmatprep.subr.mxu0 0.0
    %211 = vmatpush1.msra.mxu0 %v199
    %212 = vmatprep.subr.mxu0 0.0
    %213 = vmatpush1.msra.mxu0 %v200
    %214 = vmatprep.subr.mxu0 0.0
    %215 = vmatpush1.msra.mxu0 %v201
    %216 = vmatprep.subr.mxu0 0.0
    %217 = vmatpush1.msra.mxu0 %v202
    %218 = vmatprep.subr.mxu0 0.0
    %219 = vmatpush1.msra.mxu0 0.0
    %220 = vmatprep.subr.mxu0 0.0
    %221 = vmatpush1.msra.mxu0 0.0
    %222 = vmatprep.subr.mxu0 0.0
    %223 = vmatpush1.msra.mxu0 0.0
    %224 = vmatprep.subr.mxu0 0.0
    %225 = vmatpush1.msra.mxu0 0.0
    %226 = vmatprep.subr.mxu0 0.0
    %227 = vmatpush1.msra.mxu0 0.0
    %228 = vmatprep.subr.mxu0 0.0
    %229 = vmatpush1.msra.mxu0 0.0
    %230 = vmatprep.subr.mxu0 0.0
    %231 = vmatpush1.msra.mxu0 0.0
    %232 = vmatprep.subr.mxu0 0.0
    %233 = vmatpush1.msra.mxu0 0.0
    %234 = vmatprep.subr.mxu0 0.0
    %235 = vmatpush1.msra.mxu0 0.0
    %236 = vmatprep.subr.mxu0 0.0
    %237 = vmatpush1.msra.mxu0 0.0
    %238 = vmatprep.subr.mxu0 0.0
    %239 = vmatpush1.msra.mxu0 0.0
    %240 = vmatprep.subr.mxu0 0.0
    %241 = vmatpush1.msra.mxu0 0.0
    %242 = vmatprep.subr.mxu0 0.0
    %243 = vmatpush1.msra.mxu0 0.0
    %244 = vmatprep.subr.mxu0 0.0
    %245 = vmatpush1.msra.mxu0 0.0
    %246 = vmatprep.subr.mxu0 0.0
    %247 = vmatpush1.msra.mxu0 0.0
    %248 = vmatprep.subr.mxu0 0.0
    %249 = vmatpush1.msra.mxu0 0.0
    %250 = vmatprep.subr.mxu0 0.0
    %251 = vmatpush1.msra.mxu0 0.0
    %252 = vmatprep.subr.mxu0 0.0
    %253 = vmatpush1.msra.mxu0 0.0
    %254 = vmatprep.subr.mxu0 0.0
    %255 = vmatpush1.msra.mxu0 0.0
    %256 = vmatprep.subr.mxu0 0.0
    %257 = vmatpush1.msra.mxu0 0.0
    %258 = vmatprep.subr.mxu0 0.0
    %259 = vmatpush1.msra.mxu0 0.0
    %260 = vmatprep.subr.mxu0 0.0
    %261 = vmatpush1.msra.mxu0 0.0
    %262 = vmatprep.subr.mxu0 0.0
    %263 = vmatpush1.msra.mxu0 0.0
    %264 = vmatprep.subr.mxu0 0.0
    %265 = vmatpush1.msra.mxu0 0.0
    %266 = vmatprep.subr.mxu0 0.0
    %267 = vmatpush1.msra.mxu0 0.0
    %268 = vmatprep.subr.mxu0 0.0
    %269 = vmatpush1.msra.mxu0 0.0
    %270 = vmatprep.subr.mxu0 0.0
    %271 = vmatpush1.msra.mxu0 0.0
    %272 = vmatprep.subr.mxu0 0.0
    %273 = vmatpush1.msra.mxu0 0.0
    %274 = vmatprep.mubr.f32.mxu0 0.0
    %275 = vmatmul.mubr.f32.gmra.mrb[0].mxu0 %v99
    %v276 = vpop.f32.mrb[0].mxu0
    %v277 = vadd.f32 %v208, %v276
    %v278 = vpop.f32.mrb[0].mxu0
    %279 = vmatprep.mubr.f32.mxu0 0.0
    %280 = vmatmul.mubr.f32.gmra.mrb[0].mxu0 %v102
    %v281 = vpop.f32.mrb[0].mxu0
    %v282 = vadd.f32 %v208, %v281
    %v283 = vpop.f32.mrb[0].mxu0
    %284 = vmatprep.mubr.f32.mxu0 0.0
    %285 = vmatmul.mubr.f32.gmra.mrb[0].mxu0 %v105
    %v286 = vpop.f32.mrb[0].mxu0
    %v287 = vadd.f32 %v208, %v286
    %v288 = vpop.f32.mrb[0].mxu0
    %289 = vmatprep.mubr.f32.mxu0 0.0
    %290 = vmatmul.mubr.f32.gmra.mrb[0].mxu0 %v108
    %v291 = vpop.f32.mrb[0].mxu0
    %v292 = vadd.f32 %v208, %v291
    %v293 = vpop.f32.mrb[0].mxu0
    %294 = vdwg.mxu0
    %v295 = vld [vmem:[#allocation8] sm:$0xff]
    %v296 = vld [vmem:[#allocation8 + $0x8] sm:$0xff]
    %v297 = vld [vmem:[#allocation8 + $0x10] sm:$0xff]
    %v298 = vld [vmem:[#allocation8 + $0x18] sm:$0xff]
    %v299 = vld [vmem:[%s6] sm:$0x1]
    %v301 = vlaneseq
    %v302 = vshrl.u32 %v301, 7
    %v303 = vsub.s32 0, %v302
    %v304 = vrot.slane %v299, %v303
    %306 = vmatprep.subr.mxu0 0.0
    %307 = vmatpush1.msra.mxu0 %v295
    %308 = vmatprep.subr.mxu0 0.0
    %309 = vmatpush1.msra.mxu0 %v296
    %310 = vmatprep.subr.mxu0 0.0
    %311 = vmatpush1.msra.mxu0 %v297
    %312 = vmatprep.subr.mxu0 0.0
    %313 = vmatpush1.msra.mxu0 %v298
    %314 = vmatprep.subr.mxu0 0.0
    %315 = vmatpush1.msra.mxu0 0.0
    %316 = vmatprep.subr.mxu0 0.0
    %317 = vmatpush1.msra.mxu0 0.0
    %318 = vmatprep.subr.mxu0 0.0
    %319 = vmatpush1.msra.mxu0 0.0
    %320 = vmatprep.subr.mxu0 0.0
    %321 = vmatpush1.msra.mxu0 0.0
    %322 = vmatprep.subr.mxu0 0.0
    %323 = vmatpush1.msra.mxu0 0.0
    %324 = vmatprep.subr.mxu0 0.0
    %325 = vmatpush1.msra.mxu0 0.0
    %326 = vmatprep.subr.mxu0 0.0
    %327 = vmatpush1.msra.mxu0 0.0
    %328 = vmatprep.subr.mxu0 0.0
    %329 = vmatpush1.msra.mxu0 0.0
    %330 = vmatprep.subr.mxu0 0.0
    %331 = vmatpush1.msra.mxu0 0.0
    %332 = vmatprep.subr.mxu0 0.0
    %333 = vmatpush1.msra.mxu0 0.0
    %334 = vmatprep.subr.mxu0 0.0
    %335 = vmatpush1.msra.mxu0 0.0
    %336 = vmatprep.subr.mxu0 0.0
    %337 = vmatpush1.msra.mxu0 0.0
    %338 = vmatprep.subr.mxu0 0.0
    %339 = vmatpush1.msra.mxu0 0.0
    %340 = vmatprep.subr.mxu0 0.0
    %341 = vmatpush1.msra.mxu0 0.0
    %342 = vmatprep.subr.mxu0 0.0
    %343 = vmatpush1.msra.mxu0 0.0
    %344 = vmatprep.subr.mxu0 0.0
    %345 = vmatpush1.msra.mxu0 0.0
    %346 = vmatprep.subr.mxu0 0.0
    %347 = vmatpush1.msra.mxu0 0.0
    %348 = vmatprep.subr.mxu0 0.0
    %349 = vmatpush1.msra.mxu0 0.0
    %350 = vmatprep.subr.mxu0 0.0
    %351 = vmatpush1.msra.mxu0 0.0
    %352 = vmatprep.subr.mxu0 0.0
    %353 = vmatpush1.msra.mxu0 0.0
    %354 = vmatprep.subr.mxu0 0.0
    %355 = vmatpush1.msra.mxu0 0.0
    %356 = vmatprep.subr.mxu0 0.0
    %357 = vmatpush1.msra.mxu0 0.0
    %358 = vmatprep.subr.mxu0 0.0
    %359 = vmatpush1.msra.mxu0 0.0
    %360 = vmatprep.subr.mxu0 0.0
    %361 = vmatpush1.msra.mxu0 0.0
    %362 = vmatprep.subr.mxu0 0.0
    %363 = vmatpush1.msra.mxu0 0.0
    %364 = vmatprep.subr.mxu0 0.0
    %365 = vmatpush1.msra.mxu0 0.0
    %366 = vmatprep.subr.mxu0 0.0
    %367 = vmatpush1.msra.mxu0 0.0
    %368 = vmatprep.subr.mxu0 0.0
    %369 = vmatpush1.msra.mxu0 0.0
    %370 = vmatprep.mubr.f32.mxu0 0.0
    %371 = vmatmul.mubr.f32.gmra.mrb[0].mxu0 %v99
    %v372 = vpop.f32.mrb[0].mxu0
    %v373 = vadd.f32 %v304, %v372
    %v374 = vpop.f32.mrb[0].mxu0
    %375 = vmatprep.mubr.f32.mxu0 0.0
    %376 = vmatmul.mubr.f32.gmra.mrb[0].mxu0 %v102
    %v377 = vpop.f32.mrb[0].mxu0
    %v378 = vadd.f32 %v304, %v377
    %v379 = vpop.f32.mrb[0].mxu0
    %380 = vmatprep.mubr.f32.mxu0 0.0
    %381 = vmatmul.mubr.f32.gmra.mrb[0].mxu0 %v105
    %v382 = vpop.f32.mrb[0].mxu0
    %v383 = vadd.f32 %v304, %v382
    %v384 = vpop.f32.mrb[0].mxu0
    %385 = vmatprep.mubr.f32.mxu0 0.0
    %386 = vmatmul.mubr.f32.gmra.mrb[0].mxu0 %v108
    %v387 = vpop.f32.mrb[0].mxu0
    %v388 = vadd.f32 %v304, %v387
    %v389 = vpop.f32.mrb[0].mxu0
    %390 = vdwg.mxu0
    %v392 = vsel %vm97, %v195, 0
    %v395 = vsel %vm97, %v196, 0
    %v398 = vsel %vm97, %v277, 0
    %v401 = vsel %vm97, %v282, 0
    %403 = vmatprep.subr.mxu0 0.0
    %404 = vmatpush1.xpose.msra.mxu0 %v398
    %405 = vmatprep.subr.mxu0 0.0
    %406 = vmatpush1.xpose.msra.mxu0 %v401
    %407 = vmatprep.subr.mxu0 0.0
    %408 = vmatpush1.xpose.msra.mxu0 0.0
    %409 = vmatprep.subr.mxu0 0.0
    %410 = vmatpush1.xpose.msra.mxu0 0.0
    %411 = vmatprep.subr.mxu0 0.0
    %412 = vmatpush1.xpose.msra.mxu0 0.0
    %413 = vmatprep.subr.mxu0 0.0
    %414 = vmatpush1.xpose.msra.mxu0 0.0
    %415 = vmatprep.subr.mxu0 0.0
    %416 = vmatpush1.xpose.msra.mxu0 0.0
    %417 = vmatprep.subr.mxu0 0.0
    %418 = vmatpush1.xpose.msra.mxu0 0.0
    %419 = vmatprep.subr.mxu0 0.0
    %420 = vmatpush1.xpose.msra.mxu0 0.0
    %421 = vmatprep.subr.mxu0 0.0
    %422 = vmatpush1.xpose.msra.mxu0 0.0
    %423 = vmatprep.subr.mxu0 0.0
    %424 = vmatpush1.xpose.msra.mxu0 0.0
    %425 = vmatprep.subr.mxu0 0.0
    %426 = vmatpush1.xpose.msra.mxu0 0.0
    %427 = vmatprep.subr.mxu0 0.0
    %428 = vmatpush1.xpose.msra.mxu0 0.0
    %429 = vmatprep.subr.mxu0 0.0
    %430 = vmatpush1.xpose.msra.mxu0 0.0
    %431 = vmatprep.subr.mxu0 0.0
    %432 = vmatpush1.xpose.msra.mxu0 0.0
    %433 = vmatprep.subr.mxu0 0.0
    %434 = vmatpush1.xpose.msra.mxu0 0.0
    %435 = vmatprep.subr.mxu0 0.0
    %436 = vmatpush1.xpose.msra.mxu0 0.0
    %437 = vmatprep.subr.mxu0 0.0
    %438 = vmatpush1.xpose.msra.mxu0 0.0
    %439 = vmatprep.subr.mxu0 0.0
    %440 = vmatpush1.xpose.msra.mxu0 0.0
    %441 = vmatprep.subr.mxu0 0.0
    %442 = vmatpush1.xpose.msra.mxu0 0.0
    %443 = vmatprep.subr.mxu0 0.0
    %444 = vmatpush1.xpose.msra.mxu0 0.0
    %445 = vmatprep.subr.mxu0 0.0
    %446 = vmatpush1.xpose.msra.mxu0 0.0
    %447 = vmatprep.subr.mxu0 0.0
    %448 = vmatpush1.xpose.msra.mxu0 0.0
    %449 = vmatprep.subr.mxu0 0.0
    %450 = vmatpush1.xpose.msra.mxu0 0.0
    %451 = vmatprep.subr.mxu0 0.0
    %452 = vmatpush1.xpose.msra.mxu0 0.0
    %453 = vmatprep.subr.mxu0 0.0
    %454 = vmatpush1.xpose.msra.mxu0 0.0
    %455 = vmatprep.subr.mxu0 0.0
    %456 = vmatpush1.xpose.msra.mxu0 0.0
    %457 = vmatprep.subr.mxu0 0.0
    %458 = vmatpush1.xpose.msra.mxu0 0.0
    %459 = vmatprep.subr.mxu0 0.0
    %460 = vmatpush1.xpose.msra.mxu0 0.0
    %461 = vmatprep.subr.mxu0 0.0
    %462 = vmatpush1.xpose.msra.mxu0 0.0
    %463 = vmatprep.subr.mxu0 0.0
    %464 = vmatpush1.xpose.msra.mxu0 0.0
    %465 = vmatprep.subr.mxu0 0.0
    %466 = vmatpush1.xpose.msra.mxu0 0.0
    %467 = vmatprep.mubr.f32.mxu0 0.0
    %468 = vmatmul.mubr.f32.gmra.mrb[0].mxu0 %v392
    %v469 = vpop.f32.mrb[0].mxu0
    %v470 = vadd.f32 0.0, %v469
    %v471 = vpop.f32.mrb[0].mxu0
    %472 = vmatprep.mubr.f32.mxu0 0.0
    %473 = vmatmul.mubr.f32.gmra.mrb[0].mxu0 %v395
    %v474 = vpop.f32.mrb[0].mxu0
    %v475 = vadd.f32 0.0, %v474
    %v476 = vpop.f32.mrb[0].mxu0
    %477 = vdwg.mxu0
    %v479 = vsel %vm97, %v197, 0
    %v482 = vsel %vm97, %v198, 0
    %v485 = vsel %vm97, %v287, 0
    %v488 = vsel %vm97, %v292, 0
    %490 = vmatprep.subr.mxu0 0.0
    %491 = vmatpush1.xpose.msra.mxu0 %v485
    %492 = vmatprep.subr.mxu0 0.0
    %493 = vmatpush1.xpose.msra.mxu0 %v488
    %494 = vmatprep.subr.mxu0 0.0
    %495 = vmatpush1.xpose.msra.mxu0 0.0
    %496 = vmatprep.subr.mxu0 0.0
    %497 = vmatpush1.xpose.msra.mxu0 0.0
    %498 = vmatprep.subr.mxu0 0.0
    %499 = vmatpush1.xpose.msra.mxu0 0.0
    %500 = vmatprep.subr.mxu0 0.0
    %501 = vmatpush1.xpose.msra.mxu0 0.0
    %502 = vmatprep.subr.mxu0 0.0
    %503 = vmatpush1.xpose.msra.mxu0 0.0
    %504 = vmatprep.subr.mxu0 0.0
    %505 = vmatpush1.xpose.msra.mxu0 0.0
    %506 = vmatprep.subr.mxu0 0.0
    %507 = vmatpush1.xpose.msra.mxu0 0.0
    %508 = vmatprep.subr.mxu0 0.0
    %509 = vmatpush1.xpose.msra.mxu0 0.0
    %510 = vmatprep.subr.mxu0 0.0
    %511 = vmatpush1.xpose.msra.mxu0 0.0
    %512 = vmatprep.subr.mxu0 0.0
    %513 = vmatpush1.xpose.msra.mxu0 0.0
    %514 = vmatprep.subr.mxu0 0.0
    %515 = vmatpush1.xpose.msra.mxu0 0.0
    %516 = vmatprep.subr.mxu0 0.0
    %517 = vmatpush1.xpose.msra.mxu0 0.0
    %518 = vmatprep.subr.mxu0 0.0
    %519 = vmatpush1.xpose.msra.mxu0 0.0
    %520 = vmatprep.subr.mxu0 0.0
    %521 = vmatpush1.xpose.msra.mxu0 0.0
    %522 = vmatprep.subr.mxu0 0.0
    %523 = vmatpush1.xpose.msra.mxu0 0.0
    %524 = vmatprep.subr.mxu0 0.0
    %525 = vmatpush1.xpose.msra.mxu0 0.0
    %526 = vmatprep.subr.mxu0 0.0
    %527 = vmatpush1.xpose.msra.mxu0 0.0
    %528 = vmatprep.subr.mxu0 0.0
    %529 = vmatpush1.xpose.msra.mxu0 0.0
    %530 = vmatprep.subr.mxu0 0.0
    %531 = vmatpush1.xpose.msra.mxu0 0.0
    %532 = vmatprep.subr.mxu0 0.0
    %533 = vmatpush1.xpose.msra.mxu0 0.0
    %534 = vmatprep.subr.mxu0 0.0
    %535 = vmatpush1.xpose.msra.mxu0 0.0
    %536 = vmatprep.subr.mxu0 0.0
    %537 = vmatpush1.xpose.msra.mxu0 0.0
    %538 = vmatprep.subr.mxu0 0.0
    %539 = vmatpush1.xpose.msra.mxu0 0.0
    %540 = vmatprep.subr.mxu0 0.0
    %541 = vmatpush1.xpose.msra.mxu0 0.0
    %542 = vmatprep.subr.mxu0 0.0
    %543 = vmatpush1.xpose.msra.mxu0 0.0
    %544 = vmatprep.subr.mxu0 0.0
    %545 = vmatpush1.xpose.msra.mxu0 0.0
    %546 = vmatprep.subr.mxu0 0.0
    %547 = vmatpush1.xpose.msra.mxu0 0.0
    %548 = vmatprep.subr.mxu0 0.0
    %549 = vmatpush1.xpose.msra.mxu0 0.0
    %550 = vmatprep.subr.mxu0 0.0
    %551 = vmatpush1.xpose.msra.mxu0 0.0
    %552 = vmatprep.subr.mxu0 0.0
    %553 = vmatpush1.xpose.msra.mxu0 0.0
    %554 = vmatprep.mubr.f32.mxu0 0.0
    %555 = vmatmul.mubr.f32.gmra.mrb[0].mxu0 %v479
    %v556 = vpop.f32.mrb[0].mxu0
    %v557 = vadd.f32 0.0, %v556
    %v558 = vpop.f32.mrb[0].mxu0
    %559 = vmatprep.mubr.f32.mxu0 0.0
    %560 = vmatmul.mubr.f32.gmra.mrb[0].mxu0 %v482
    %v561 = vpop.f32.mrb[0].mxu0
    %v562 = vadd.f32 0.0, %v561
    %v563 = vpop.f32.mrb[0].mxu0
    %564 = vdwg.mxu0
    %vm565 = vcmask 130048
    %v566 = vsel %vm565, %v470, -inf
    %567 = vmax.xlane.f32.xlu0 %v566
    %v568 = vpop.xlane.xlu0 %567
    %v569 = vsel %vm565, %v475, -inf
    %570 = vmax.xlane.f32.xlu0 %v569
    %v571 = vpop.xlane.xlu0 %570
    %v572 = vsel %vm565, %v557, -inf
    %573 = vmax.xlane.f32.xlu0 %v572
    %v574 = vpop.xlane.xlu0 %573
    %v575 = vsel %vm565, %v562, -inf
    %576 = vmax.xlane.f32.xlu0 %v575
    %v577 = vpop.xlane.xlu0 %576
    %v578 = vsub.f32 %v470, %v568
    %v579 = vsub.f32 %v475, %v571
    %v580 = vsub.f32 %v557, %v574
    %v581 = vsub.f32 %v562, %v577
    %v582 = vmul.f32 %v578, 1.442695
    %v583 = vpow.pop %v582
    %v584 = vmul.f32 %v579, 1.442695
    %v585 = vpow.pop %v584
    %v586 = vmul.f32 %v580, 1.442695
    %v587 = vpow.pop %v586
    %v588 = vmul.f32 %v581, 1.442695
    %v589 = vpow.pop %v588
    %v590 = vsel %vm565, %v583, 0.0
    %591 = vadd.xlane.f32.xlu0 %v590
    %v592 = vpop.xlane.xlu0 %591
    %v593 = vsel %vm565, %v585, 0.0
    %594 = vadd.xlane.f32.xlu0 %v593
    %v595 = vpop.xlane.xlu0 %594
    %v596 = vsel %vm565, %v587, 0.0
    %597 = vadd.xlane.f32.xlu0 %v596
    %v598 = vpop.xlane.xlu0 %597
    %v599 = vsel %vm565, %v589, 0.0
    %600 = vadd.xlane.f32.xlu0 %v599
    %v601 = vpop.xlane.xlu0 %600
    %v602 = vrcp.pop %v592
    %v603 = vmul.f32 %v583, %v602
    %v604 = vrcp.pop %v595
    %v605 = vmul.f32 %v585, %v604
    %v606 = vrcp.pop %v598
    %v607 = vmul.f32 %v587, %v606
    %v608 = vrcp.pop %v601
    %v609 = vmul.f32 %v589, %v608
    %v611 = vsel %vm565, %v603, 0
    %v614 = vsel %vm565, %v605, 0
    %616 = vmatprep.subr.mxu0 0.0
    %617 = vmatpush1.msra.mxu0 %v373
    %618 = vmatprep.subr.mxu0 0.0
    %619 = vmatpush1.msra.mxu0 %v378
    %620 = vmatprep.subr.mxu0 0.0
    %621 = vmatpush1.msra.mxu0 0.0
    %622 = vmatprep.subr.mxu0 0.0
    %623 = vmatpush1.msra.mxu0 0.0
    %624 = vmatprep.subr.mxu0 0.0
    %625 = vmatpush1.msra.mxu0 0.0
    %626 = vmatprep.subr.mxu0 0.0
    %627 = vmatpush1.msra.mxu0 0.0
    %628 = vmatprep.subr.mxu0 0.0
    %629 = vmatpush1.msra.mxu0 0.0
    %630 = vmatprep.subr.mxu0 0.0
    %631 = vmatpush1.msra.mxu0 0.0
    %632 = vmatprep.subr.mxu0 0.0
    %633 = vmatpush1.msra.mxu0 0.0
    %634 = vmatprep.subr.mxu0 0.0
    %635 = vmatpush1.msra.mxu0 0.0
    %636 = vmatprep.subr.mxu0 0.0
    %637 = vmatpush1.msra.mxu0 0.0
    %638 = vmatprep.subr.mxu0 0.0
    %639 = vmatpush1.msra.mxu0 0.0
    %640 = vmatprep.subr.mxu0 0.0
    %641 = vmatpush1.msra.mxu0 0.0
    %642 = vmatprep.subr.mxu0 0.0
    %643 = vmatpush1.msra.mxu0 0.0
    %644 = vmatprep.subr.mxu0 0.0
    %645 = vmatpush1.msra.mxu0 0.0
    %646 = vmatprep.subr.mxu0 0.0
    %647 = vmatpush1.msra.mxu0 0.0
    %648 = vmatprep.subr.mxu0 0.0
    %649 = vmatpush1.msra.mxu0 0.0
    %650 = vmatprep.subr.mxu0 0.0
    %651 = vmatpush1.msra.mxu0 0.0
    %652 = vmatprep.subr.mxu0 0.0
    %653 = vmatpush1.msra.mxu0 0.0
    %654 = vmatprep.subr.mxu0 0.0
    %655 = vmatpush1.msra.mxu0 0.0
    %656 = vmatprep.subr.mxu0 0.0
    %657 = vmatpush1.msra.mxu0 0.0
    %658 = vmatprep.subr.mxu0 0.0
    %659 = vmatpush1.msra.mxu0 0.0
    %660 = vmatprep.subr.mxu0 0.0
    %661 = vmatpush1.msra.mxu0 0.0
    %662 = vmatprep.subr.mxu0 0.0
    %663 = vmatpush1.msra.mxu0 0.0
    %664 = vmatprep.subr.mxu0 0.0
    %665 = vmatpush1.msra.mxu0 0.0
    %666 = vmatprep.subr.mxu0 0.0
    %667 = vmatpush1.msra.mxu0 0.0
    %668 = vmatprep.subr.mxu0 0.0
    %669 = vmatpush1.msra.mxu0 0.0
    %670 = vmatprep.subr.mxu0 0.0
    %671 = vmatpush1.msra.mxu0 0.0
    %672 = vmatprep.subr.mxu0 0.0
    %673 = vmatpush1.msra.mxu0 0.0
    %674 = vmatprep.subr.mxu0 0.0
    %675 = vmatpush1.msra.mxu0 0.0
    %676 = vmatprep.subr.mxu0 0.0
    %677 = vmatpush1.msra.mxu0 0.0
    %678 = vmatprep.subr.mxu0 0.0
    %679 = vmatpush1.msra.mxu0 0.0
    %680 = vmatprep.mubr.f32.mxu0 0.0
    %681 = vmatmul.mubr.f32.gmra.mrb[0].mxu0 %v611
    %v682 = vpop.f32.mrb[0].mxu0
    %v683 = vadd.f32 0.0, %v682
    %v684 = vpop.f32.mrb[0].mxu0
    %685 = vmatprep.mubr.f32.mxu0 0.0
    %686 = vmatmul.mubr.f32.gmra.mrb[0].mxu0 %v614
    %v687 = vpop.f32.mrb[0].mxu0
    %v688 = vadd.f32 0.0, %v687
    %v689 = vpop.f32.mrb[0].mxu0
    %690 = vdwg.mxu0
    %v692 = vsel %vm565, %v607, 0
    %v695 = vsel %vm565, %v609, 0
    %697 = vmatprep.subr.mxu0 0.0
    %698 = vmatpush1.msra.mxu0 %v383
    %699 = vmatprep.subr.mxu0 0.0
    %700 = vmatpush1.msra.mxu0 %v388
    %701 = vmatprep.subr.mxu0 0.0
    %702 = vmatpush1.msra.mxu0 0.0
    %703 = vmatprep.subr.mxu0 0.0
    %704 = vmatpush1.msra.mxu0 0.0
    %705 = vmatprep.subr.mxu0 0.0
    %706 = vmatpush1.msra.mxu0 0.0
    %707 = vmatprep.subr.mxu0 0.0
    %708 = vmatpush1.msra.mxu0 0.0
    %709 = vmatprep.subr.mxu0 0.0
    %710 = vmatpush1.msra.mxu0 0.0
    %711 = vmatprep.subr.mxu0 0.0
    %712 = vmatpush1.msra.mxu0 0.0
    %713 = vmatprep.subr.mxu0 0.0
    %714 = vmatpush1.msra.mxu0 0.0
    %715 = vmatprep.subr.mxu0 0.0
    %716 = vmatpush1.msra.mxu0 0.0
    %717 = vmatprep.subr.mxu0 0.0
    %718 = vmatpush1.msra.mxu0 0.0
    %719 = vmatprep.subr.mxu0 0.0
    %720 = vmatpush1.msra.mxu0 0.0
    %721 = vmatprep.subr.mxu0 0.0
    %722 = vmatpush1.msra.mxu0 0.0
    %723 = vmatprep.subr.mxu0 0.0
    %724 = vmatpush1.msra.mxu0 0.0
    %725 = vmatprep.subr.mxu0 0.0
    %726 = vmatpush1.msra.mxu0 0.0
    %727 = vmatprep.subr.mxu0 0.0
    %728 = vmatpush1.msra.mxu0 0.0
    %729 = vmatprep.subr.mxu0 0.0
    %730 = vmatpush1.msra.mxu0 0.0
    %731 = vmatprep.subr.mxu0 0.0
    %732 = vmatpush1.msra.mxu0 0.0
    %733 = vmatprep.subr.mxu0 0.0
    %734 = vmatpush1.msra.mxu0 0.0
    %735 = vmatprep.subr.mxu0 0.0
    %736 = vmatpush1.msra.mxu0 0.0
    %737 = vmatprep.subr.mxu0 0.0
    %738 = vmatpush1.msra.mxu0 0.0
    %739 = vmatprep.subr.mxu0 0.0
    %740 = vmatpush1.msra.mxu0 0.0
    %741 = vmatprep.subr.mxu0 0.0
    %742 = vmatpush1.msra.mxu0 0.0
    %743 = vmatprep.subr.mxu0 0.0
    %744 = vmatpush1.msra.mxu0 0.0
    %745 = vmatprep.subr.mxu0 0.0
    %746 = vmatpush1.msra.mxu0 0.0
    %747 = vmatprep.subr.mxu0 0.0
    %748 = vmatpush1.msra.mxu0 0.0
    %749 = vmatprep.subr.mxu0 0.0
    %750 = vmatpush1.msra.mxu0 0.0
    %751 = vmatprep.subr.mxu0 0.0
    %752 = vmatpush1.msra.mxu0 0.0
    %753 = vmatprep.subr.mxu0 0.0
    %754 = vmatpush1.msra.mxu0 0.0
    %755 = vmatprep.subr.mxu0 0.0
    %756 = vmatpush1.msra.mxu0 0.0
    %757 = vmatprep.subr.mxu0 0.0
    %758 = vmatpush1.msra.mxu0 0.0
    %759 = vmatprep.subr.mxu0 0.0
    %760 = vmatpush1.msra.mxu0 0.0
    %761 = vmatprep.mubr.f32.mxu0 0.0
    %762 = vmatmul.mubr.f32.gmra.mrb[0].mxu0 %v692
    %v763 = vpop.f32.mrb[0].mxu0
    %v764 = vadd.f32 0.0, %v763
    %v765 = vpop.f32.mrb[0].mxu0
    %766 = vmatprep.mubr.f32.mxu0 0.0
    %767 = vmatmul.mubr.f32.gmra.mrb[0].mxu0 %v695
    %v768 = vpop.f32.mrb[0].mxu0
    %v769 = vadd.f32 0.0, %v768
    %v770 = vpop.f32.mrb[0].mxu0
    %771 = vdwg.mxu0
    %772 = vst.msk [vmem:[#allocation10] sm:$0xff] %vm97, %v683
    %773 = vst.msk [vmem:[#allocation10 + $0x8] sm:$0xff] %vm97, %v688
    %774 = vst.msk [vmem:[#allocation10 + $0x10] sm:$0xff] %vm97, %v764
    %775 = vst.msk [vmem:[#allocation10 + $0x18] sm:$0xff] %vm97, %v769
    // Predicated region
    $region46: #{attention_forward.1} parent=1 // pred_check
      _
    $region47: #{attention_forward.1} parent=1 // pred_check_branch
      %777 = sbr.rel (0) target = $region49
    $region48: #{attention_forward.1} parent=1 // pred_region
      %s779 = ssub.s32 512, 512
      %780 = vsyncadd [#allocation4], %s779
      %s781 = sshll.u32 [#allocation10], 4
      %s782 = int_to_ptr.vmem [resolvable:$true] %s781
      %787 = dma.vmem_to_hbm [thread:$0]  %s782, 512, %s7, [#allocation4], 128, 128, 8
    $region49: #{attention_forward.1} parent=1 // pred_fallthru
      _
    // Predicated region
    $region50: #{attention_forward.1} parent=1 // pred_check
      _
    $region51: #{attention_forward.1} parent=1 // pred_check_branch
      %789 = sbr.rel (0) target = $region53
    $region52: #{attention_forward.1} parent=1 // pred_region
      %790 = dma.done [#allocation4], 512
    $region53: #{attention_forward.1} parent=1 // pred_fallthru
      _
    %791 = vsyncpa [#allocation3], 1
    %792 = vsyncpa [#allocation6], 1
    %793 = vsyncpa [#allocation9], 1
    %794 = vsyncpa [#allocation4], 1

</llo_original>
